<compile_context>
chip_gen: v7x
topology: tpu7x:2x2x1
jax: 0.10.0
libtpu: 0.0.40
codegen_flags: <defaults>
</compile_context>

<pallas_src>
import functools

import jax
import jax.numpy as jnp
from jax.experimental import pallas as pl
from jax.experimental.pallas import tpu as pltpu

_LANE = 128
_SUB = 8


def _bce_kernel(x_ref, t_ref, o_ref, *, w0, w1, rows_valid, block_rows):
    i = pl.program_id(0)

    x = x_ref[...].astype(jnp.float32)
    t = t_ref[...].astype(jnp.float32)

    # weight = w0 everywhere, w1 where target > 0; minus sign folded in.
    wneg = jnp.where(t > 0, jnp.float32(-w1), jnp.float32(-w0))

    # PyTorch BCELoss clamps log terms at -100 to avoid -inf.
    log_x = jnp.maximum(jnp.log(x), jnp.float32(-100.0))
    log_1mx = jnp.maximum(jnp.log(1.0 - x), jnp.float32(-100.0))
    # -w * (t*log(x) + (1-t)*log(1-x)), reassociated to save VALU ops.
    loss = wneg * (log_1mx + t * (log_x - log_1mx))

    n_stack = block_rows // _SUB

    # Common path: unmasked per-block partial sums (elementwise vreg adds).
    o_ref[0] = loss.reshape(n_stack, _SUB, _LANE).sum(axis=0)

    # Only the final (ragged) block pays for the OOB-row mask.
    # Select (not multiply) so NaN/garbage in OOB rows cannot propagate.
    @pl.when((i + 1) * block_rows > rows_valid)
    def _():
        row = jax.lax.broadcasted_iota(jnp.int32, (block_rows, 1), 0)
        valid = (i * block_rows + row) < rows_valid
        masked = jnp.where(valid, loss, jnp.float32(0.0))
        o_ref[0] = masked.reshape(n_stack, _SUB, _LANE).sum(axis=0)


def _elementwise_bce_sum(x, t, *, w0, w1):
    """Plain-JAX weighted-BCE sum (used for the <128-element tail)."""
    x = x.astype(jnp.float32)
    t = t.astype(jnp.float32)
    wneg = jnp.where(t > 0, jnp.float32(-w1), jnp.float32(-w0))
    log_x = jnp.maximum(jnp.log(x), -100.0)
    log_1mx = jnp.maximum(jnp.log(1.0 - x), -100.0)
    return jnp.sum(wneg * (log_1mx + t * (log_x - log_1mx)))


def _sublane_multiple(*arrays):
    # f32 -> 8, bf16/f16 -> 16, int8/fp8 -> 32 (packed sublanes)
    min_itemsize = min(int(jnp.dtype(a.dtype).itemsize) for a in arrays)
    return _SUB * max(1, 4 // max(1, min_itemsize))


def my_bce_loss(inp, target, *, w0, w1, block_rows=2048):
    assert inp.shape == target.shape
    n = int(inp.size)
    if n == 0:
        return jnp.float32(0.0)

    x_flat = inp.reshape(-1)
    t_flat = target.reshape(-1)

    rows = n // _LANE
    main = rows * _LANE
    rem = n - main

    # Sub-128-element tail handled in plain JAX (no HBM-copy padding).
    if rem:
        tail_sum = _elementwise_bce_sum(x_flat[main:], t_flat[main:],
                                        w0=w0, w1=w1)
    else:
        tail_sum = jnp.float32(0.0)

    if rows == 0:
        return tail_sum / jnp.float32(n)

    x2 = (x_flat[:main] if rem else x_flat).reshape(rows, _LANE)
    t2 = (t_flat[:main] if rem else t_flat).reshape(rows, _LANE)

    # Block rows: capped, rounded to the dtype's sublane packing multiple.
    mult = _sublane_multiple(x2, t2)
    br = min(int(block_rows), ((rows + mult - 1) // mult) * mult)
    br = max(mult, ((br + mult - 1) // mult) * mult)
    num_blocks = pl.cdiv(rows, br)

    # Prefer an even number of blocks (balances the 2 TensorCores on v7x).
    if num_blocks > 1 and num_blocks % 2 == 1:
        br2 = ((pl.cdiv(rows, num_blocks + 1) + mult - 1) // mult) * mult
        if mult <= br2 <= br:
            br = br2
            num_blocks = pl.cdiv(rows, br)

    kernel = functools.partial(_bce_kernel, w0=float(w0), w1=float(w1),
                               rows_valid=int(rows), block_rows=int(br))

    in_itemsize = (int(jnp.dtype(x2.dtype).itemsize)
                   + int(jnp.dtype(t2.dtype).itemsize))
    bytes_accessed = rows * _LANE * in_itemsize + num_blocks * _SUB * _LANE * 4
    # 2 inputs x 2 pipeline buffers x (br, 128) tile, plus generous headroom.
    vmem_limit = min(2 * br * _LANE * in_itemsize + (16 << 20), 64 << 20)

    partials = pl.pallas_call(
        kernel,
        out_shape=jax.ShapeDtypeStruct((num_blocks, _SUB, _LANE), jnp.float32),
        grid_spec=pltpu.PrefetchScalarGridSpec(
            num_scalar_prefetch=0,
            grid=(num_blocks,),
            in_specs=[
                pl.BlockSpec((br, _LANE), lambda i: (i, 0)),
                pl.BlockSpec((br, _LANE), lambda i: (i, 0)),
            ],
            out_specs=pl.BlockSpec((1, _SUB, _LANE), lambda i: (i, 0, 0)),
        ),
        compiler_params=pltpu.CompilerParams(
            dimension_semantics=("parallel",),
            vmem_limit_bytes=int(vmem_limit)),
        cost_estimate=pl.CostEstimate(
            flops=8 * main, transcendentals=2 * main,
            bytes_accessed=int(bytes_accessed)),
    )(x2, t2)

    # Tiny epilogue reduction in plain JAX (keeps the grid axis parallel).
    return (jnp.sum(partials) + tail_sum) / jnp.float32(n)


def _ref_bce_loss(inp, target, *, w0, w1):
    w = jnp.where(target > 0, w1, w0).astype(jnp.float32)
    x = inp.astype(jnp.float32)
    t = target.astype(jnp.float32)
    log_x = jnp.maximum(jnp.log(x), -100.0)
    log_1mx = jnp.maximum(jnp.log(1.0 - x), -100.0)
    loss = -w * (t * log_x + (1.0 - t) * log_1mx)
    return jnp.mean(loss)


if __name__ == "__main__":
    key = jax.random.PRNGKey(0)
    k1, k2, k3, k4 = jax.random.split(key, 4)
    w0, w1 = 1.0, 3.0

    # Lane-aligned case (module-shaped inputs: probabilities vs {0,1} targets).
    B, C, H, W = 2, 4, 16, 16
    inp = jax.nn.sigmoid(jax.random.normal(k1, (B, C, H, W), jnp.float32))
    target = (jax.random.uniform(k2, (B, C, H, W)) > 0.5).astype(jnp.float32)
    out = jax.block_until_ready(my_bce_loss(inp, target, w0=w0, w1=w1))
    ref = _ref_bce_loss(inp, target, w0=w0, w1=w1)
    assert jnp.allclose(out, ref, rtol=1e-5, atol=1e-6), (out, ref)

    # Ragged case: exercises the plain-JAX tail path and the pl.when mask on
    # the last partial block (2240 elems -> 17 full rows + 64-elem tail).
    shape2 = (2, 4, 35, 8)
    inp2 = jax.nn.sigmoid(jax.random.normal(k3, shape2, jnp.float32))
    target2 = (jax.random.uniform(k4, shape2) > 0.5).astype(jnp.float32)
    out2 = jax.block_until_ready(
        my_bce_loss(inp2, target2, w0=w0, w1=w1, block_rows=8))
    ref2 = _ref_bce_loss(inp2, target2, w0=w0, w1=w1)
    assert jnp.allclose(out2, ref2, rtol=1e-5, atol=1e-6), (out2, ref2)

    print("KERNEL_OK")
</pallas_src>

<mosaic_0001>
module attributes {stable_mosaic.version = 11 : i64} {
  func.func @_bce_kernel(%arg0: i32, %arg1: memref<16x128xf32, #tpu.memory_space<vmem>>, %arg2: memref<16x128xf32, #tpu.memory_space<vmem>>, %arg3: memref<1x8x128xf32, #tpu.memory_space<vmem>>) attributes {dimension_semantics = [#tpu.dimension_semantics<parallel>], iteration_bounds = array<i64: 1>, scalar_prefetch = 0 : i64, scratch_operands = 0 : i64, tpu.core_type = #tpu.core_type<tc>, window_params = [{transform_indices = @transform_0, window_bounds = array<i64: 16, 128>}, {transform_indices = @transform_1, window_bounds = array<i64: 16, 128>}, {transform_indices = @transform_2, window_bounds = array<i64: 1, 8, 128>}]} {
    %c0 = arith.constant 0 : index
    %c0_0 = arith.constant 0 : index
    %0 = vector.load %arg1[%c0, %c0_0] : memref<16x128xf32, #tpu.memory_space<vmem>>, vector<16x128xf32>
    %c0_1 = arith.constant 0 : index
    %c0_2 = arith.constant 0 : index
    %1 = vector.load %arg2[%c0_1, %c0_2] : memref<16x128xf32, #tpu.memory_space<vmem>>, vector<16x128xf32>
    %cst = arith.constant 0.000000e+00 : f32
    %2 = vector.broadcast %cst : f32 to vector<16x128xf32>
    %3 = arith.cmpf ogt, %1, %2 : vector<16x128xf32>
    %cst_3 = arith.constant -3.000000e+00 : f32
    %cst_4 = arith.constant -1.000000e+00 : f32
    %4 = vector.broadcast %cst_3 : f32 to vector<16x128xf32>
    %5 = vector.broadcast %cst_4 : f32 to vector<16x128xf32>
    %6 = arith.select %3, %4, %5 : vector<16x128xi1>, vector<16x128xf32>
    %7 = math.log %0 : vector<16x128xf32>
    %cst_5 = arith.constant -1.000000e+02 : f32
    %8 = vector.broadcast %cst_5 : f32 to vector<16x128xf32>
    %9 = arith.maximumf %7, %8 : vector<16x128xf32>
    %cst_6 = arith.constant 1.000000e+00 : f32
    %10 = vector.broadcast %cst_6 : f32 to vector<16x128xf32>
    %11 = arith.subf %10, %0 : vector<16x128xf32>
    %12 = math.log %11 : vector<16x128xf32>
    %cst_7 = arith.constant -1.000000e+02 : f32
    %13 = vector.broadcast %cst_7 : f32 to vector<16x128xf32>
    %14 = arith.maximumf %12, %13 : vector<16x128xf32>
    %15 = arith.subf %9, %14 : vector<16x128xf32>
    %16 = arith.mulf %1, %15 : vector<16x128xf32>
    %17 = arith.addf %14, %16 : vector<16x128xf32>
    %18 = arith.mulf %6, %17 : vector<16x128xf32>
    %19 = vector.shape_cast %18 : vector<16x128xf32> to vector<2x8x128xf32>
    %cst_8 = arith.constant dense<0.000000e+00> : vector<8x128xf32>
    %20 = vector.multi_reduction <add>, %19, %cst_8 [0] : vector<2x8x128xf32> to vector<8x128xf32>
    %c0_9 = arith.constant 0 : index
    %c0_10 = arith.constant 0 : index
    %c0_11 = arith.constant 0 : index
    %21 = vector.load %arg3[%c0_9, %c0_10, %c0_11] : memref<1x8x128xf32, #tpu.memory_space<vmem>>, vector<1x8x128xf32>
    %22 = vector.shape_cast %21 : vector<1x8x128xf32> to vector<8x128xf32>
    %23 = vector.shape_cast %20 : vector<8x128xf32> to vector<1x8x128xf32>
    tpu.vector_store %arg3[%c0_9, %c0_10, %c0_11], %23 {strides = array<i32>} : memref<1x8x128xf32, #tpu.memory_space<vmem>>, vector<1x8x128xf32>,
    %c1_i32 = arith.constant 1 : i32
    %24 = arith.addi %arg0, %c1_i32 : i32
    %c16_i32 = arith.constant 16 : i32
    %25 = arith.muli %24, %c16_i32 : i32
    %c16_i32_12 = arith.constant 16 : i32
    %26 = arith.cmpi sgt, %25, %c16_i32_12 : i32
    %27 = arith.extui %26 : i1 to i32
    %c0_i32 = arith.constant 0 : i32
    %28 = arith.cmpi ne, %27, %c0_i32 : i32
    scf.if %28 {
      %29 = tpu.iota {dimensions = array<i32: 0>} : vector<16x1xi32>
      %c16_i32_13 = arith.constant 16 : i32
      %30 = arith.muli %arg0, %c16_i32_13 : i32
      %31 = vector.broadcast %30 : i32 to vector<16x1xi32>
      %32 = arith.addi %31, %29 : vector<16x1xi32>
      %c16_i32_14 = arith.constant 16 : i32
      %33 = vector.broadcast %c16_i32_14 : i32 to vector<16x1xi32>
      %34 = arith.cmpi slt, %32, %33 : vector<16x1xi32>
      %cst_15 = arith.constant 0.000000e+00 : f32
      %35 = vector.shape_cast %34 : vector<16x1xi1> to vector<16x1xi1>
      %36 = vector.broadcast %35 : vector<16x1xi1> to vector<16x128xi1>
      %37 = vector.broadcast %cst_15 : f32 to vector<16x128xf32>
      %38 = arith.select %36, %18, %37 : vector<16x128xi1>, vector<16x128xf32>
      %39 = vector.shape_cast %38 : vector<16x128xf32> to vector<2x8x128xf32>
      %cst_16 = arith.constant dense<0.000000e+00> : vector<8x128xf32>
      %40 = vector.multi_reduction <add>, %39, %cst_16 [0] : vector<2x8x128xf32> to vector<8x128xf32>
      %c0_17 = arith.constant 0 : index
      %c0_18 = arith.constant 0 : index
      %c0_19 = arith.constant 0 : index
      %41 = vector.load %arg3[%c0_17, %c0_18, %c0_19] : memref<1x8x128xf32, #tpu.memory_space<vmem>>, vector<1x8x128xf32>
      %42 = vector.shape_cast %41 : vector<1x8x128xf32> to vector<8x128xf32>
      %43 = vector.shape_cast %40 : vector<8x128xf32> to vector<1x8x128xf32>
      tpu.vector_store %arg3[%c0_17, %c0_18, %c0_19], %43 {strides = array<i32>} : memref<1x8x128xf32, #tpu.memory_space<vmem>>, vector<1x8x128xf32>,
    } else {
    }
    return
  }
  func.func @transform_0(%arg0: i32) -> (i32, i32) {
    %c0_i32 = arith.constant 0 : i32
    %c0_i32_0 = arith.constant 0 : i32
    return %arg0, %c0_i32 : i32, i32
  }
  func.func @transform_1(%arg0: i32) -> (i32, i32) {
    %c0_i32 = arith.constant 0 : i32
    %c0_i32_0 = arith.constant 0 : i32
    return %arg0, %c0_i32 : i32, i32
  }
  func.func @transform_2(%arg0: i32) -> (i32, i32, i32) {
    %c0_i32 = arith.constant 0 : i32
    %c0_i32_0 = arith.constant 0 : i32
    %c0_i32_1 = arith.constant 0 : i32
    return %arg0, %c0_i32, %c0_i32_0 : i32, i32, i32
  }
}

</mosaic_0001>

<llo_original>
// kernel: tpu_custom_call.1
$region0: #{tpu_custom_call.1}
  #allocation0 [shape = 'u32[]', space=smem, size = 0x4, offset = 0x4, fixed_abs, tag = 'smem constant byte address 0x4 - core index']
  #allocation1 [shape = 'u32[144,128]{1,0:T(1,128)}', space=vmem, size = 0x12000, scoped, tag = 'internal scratch']
  %s0 = inlined_call_operand.hbm [shape: f32[16,128], index: 0, kind: input, shape index: {}]
  %s1 = inlined_call_operand.hbm [shape: f32[16,128], index: 1, kind: input, shape index: {}]
  %s2 = inlined_call_operand.hbm [shape: f32[1,8,128], index: 2, kind: output, shape index: {}]
  %s3 = sld [smem:[#allocation0]]
  $region30: #{tpu_custom_call.1} parent=0
    _
  %s5 = ssub.s32 1, %s3
  %s6 = scalar_select 0, %s5, %s3
  $region1: #{tpu_custom_call.1} parent=0
    #allocation2 [shape = 'u8[8192]{0}', space=vmem, size = 0x2000, scoped, tag = 'input window, operand 0, single buffered']
    #allocation3 [shape = 's32[1]{0}', space=sflag, size = 0x4, scoped, tag = 'scoped memory for tpu_custom_call.1']
    #allocation4 [shape = 's32[1]{0}', space=sflag, size = 0x4, scoped, tag = 'scoped memory for tpu_custom_call.1']
    #allocation5 [shape = 'u8[8192]{0}', space=vmem, size = 0x2000, scoped, tag = 'input window, operand 1, single buffered']
    #allocation6 [shape = 's32[1]{0}', space=sflag, size = 0x4, scoped, tag = 'scoped memory for tpu_custom_call.1']
    #allocation7 [shape = 'u8[4096]{0}', space=vmem, size = 0x1000, scoped, tag = 'output window, operand 0, single buffered']
    %7 = vsyncpa [#allocation3], 0
    %8 = vsyncpa [#allocation6], 0
    %9 = vsyncpa [#allocation4], 0
    // Predicated region
    $region2: #{tpu_custom_call.1} parent=1 // pred_check
      _
    $region3: #{tpu_custom_call.1} parent=1 // pred_check_branch
      %11 = sbr.rel (0) target = $region5
    $region4: #{tpu_custom_call.1} parent=1 // pred_region
      %s13 = ssub.s32 256, 256
      %14 = vsyncadd [#allocation3], %s13
      %s15 = sshll.u32 [#allocation2], 4
      %s16 = int_to_ptr.vmem [resolvable:$true] %s15
      %21 = dma.hbm_to_vmem [thread:$0]  %s0, 256, %s16, [#allocation3], 128, 128, 8
    $region5: #{tpu_custom_call.1} parent=1 // pred_fallthru
      _
    // Predicated region
    $region6: #{tpu_custom_call.1} parent=1 // pred_check
      _
    $region7: #{tpu_custom_call.1} parent=1 // pred_check_branch
      %23 = sbr.rel (0) target = $region9
    $region8: #{tpu_custom_call.1} parent=1 // pred_region
      %s25 = ssub.s32 256, 256
      %26 = vsyncadd [#allocation6], %s25
      %s27 = sshll.u32 [#allocation5], 4
      %s28 = int_to_ptr.vmem [resolvable:$true] %s27
      %33 = dma.hbm_to_vmem [thread:$0]  %s1, 256, %s28, [#allocation6], 128, 128, 8
    $region9: #{tpu_custom_call.1} parent=1 // pred_fallthru
      _
    // Predicated region
    $region10: #{tpu_custom_call.1} parent=1 // pred_check
      _
    $region11: #{tpu_custom_call.1} parent=1 // pred_check_branch
      %35 = sbr.rel (0) target = $region13
    $region12: #{tpu_custom_call.1} parent=1 // pred_region
      %36 = dma.done [#allocation3], 256
    $region13: #{tpu_custom_call.1} parent=1 // pred_fallthru
      _
    // Predicated region
    $region14: #{tpu_custom_call.1} parent=1 // pred_check
      _
    $region15: #{tpu_custom_call.1} parent=1 // pred_check_branch
      %38 = sbr.rel (0) target = $region17
    $region16: #{tpu_custom_call.1} parent=1 // pred_region
      %39 = dma.done [#allocation6], 256
    $region17: #{tpu_custom_call.1} parent=1 // pred_fallthru
      _
    %v40 = vld [vmem:[#allocation2] sm:$0xff]
    %v41 = vld [vmem:[#allocation2 + $0x8] sm:$0xff]
    %v42 = vld [vmem:[#allocation5] sm:$0xff]
    %v43 = vld [vmem:[#allocation5 + $0x8] sm:$0xff]
    %vm44 = vcmp.gt.f32.partialorder %v42, 0.0
    %vm45 = vcmp.gt.f32.partialorder %v43, 0.0
    %v46 = vsel %vm44, -3.0, -1.0
    %v47 = vsel %vm45, -3.0, -1.0
    %v48 = vlog2.pop %v40
    %v49 = vmul.f32 %v48, 0.6931472
    %v50 = vlog2.pop %v41
    %v51 = vmul.f32 %v50, 0.6931472
    %v52 = vmax.f32 %v49, -100.0
    %v53 = vmax.f32 %v51, -100.0
    %v54 = vsub.f32 1.0, %v40
    %v55 = vsub.f32 1.0, %v41
    %v56 = vlog2.pop %v54
    %v57 = vmul.f32 %v56, 0.6931472
    %v58 = vlog2.pop %v55
    %v59 = vmul.f32 %v58, 0.6931472
    %v60 = vmax.f32 %v57, -100.0
    %v61 = vmax.f32 %v59, -100.0
    %v62 = vsub.f32 %v52, %v60
    %v63 = vsub.f32 %v53, %v61
    %v64 = vmul.f32 %v42, %v62
    %v65 = vmul.f32 %v43, %v63
    %v66 = vadd.f32 %v60, %v64
    %v67 = vadd.f32 %v61, %v65
    %v68 = vmul.f32 %v46, %v66
    %v69 = vmul.f32 %v47, %v67
    %v70 = vadd.f32 %v68, %v69
    %71 = vst [vmem:[#allocation7] sm:$0xff] %v70
    %s72 = sadd.s32 0, 1
    %s73 = smul.u32 %s72, 16
    %p74 = scmp.gt.s32.totalorder %s73, 16
    // Predicated region
    $region18: #{tpu_custom_call.1} parent=1 // pred_check
      %p75 = pneg %p74
    $region19: #{tpu_custom_call.1} parent=1 // pred_check_branch
      %77 = sbr.rel (%p75) target = $region21
    $region20: #{tpu_custom_call.1} parent=1 // pred_region
      %v78 = vlaneseq
      %v79 = vshrl.u32 %v78, 7
      %v80 = vadd.s32 %v79, 8
      %s81 = smul.u32 0, 16
      %v82 = vstv %s81
      %v83 = vadd.s32 %v82, %v79
      %v84 = vadd.s32 %v82, %v80
      %vm85 = vcmp.lt.s32.totalorder %v83, 16
      %vm86 = vcmp.lt.s32.totalorder %v84, 16
      %v87 = vsel %vm85, 1, 0
      %v88 = vsel %vm86, 1, 0
      %vm89 = vcmp.eq.s32.totalorder %v87, 1
      %vm90 = vcmp.eq.s32.totalorder %v88, 1
      %v91 = vsel %vm89, %v68, 0.0
      %v92 = vsel %vm90, %v69, 0.0
      %v93 = vadd.f32 %v91, %v92
      %94 = vst [vmem:[#allocation7] sm:$0xff] %v93
    $region21: #{tpu_custom_call.1} parent=1 // pred_fallthru
      _
    // Predicated region
    $region22: #{tpu_custom_call.1} parent=1 // pred_check
      _
    $region23: #{tpu_custom_call.1} parent=1 // pred_check_branch
      %96 = sbr.rel (0) target = $region25
    $region24: #{tpu_custom_call.1} parent=1 // pred_region
      %s98 = ssub.s32 128, 128
      %99 = vsyncadd [#allocation4], %s98
      %s101 = sshll.u32 [#allocation7], 4
      %s102 = int_to_ptr.vmem [resolvable:$true] %s101
      %104 = dma.vmem_to_hbm [thread:$0]  %s102, 128, %s2, [#allocation4]
    $region25: #{tpu_custom_call.1} parent=1 // pred_fallthru
      _
    // Predicated region
    $region26: #{tpu_custom_call.1} parent=1 // pred_check
      _
    $region27: #{tpu_custom_call.1} parent=1 // pred_check_branch
      %106 = sbr.rel (0) target = $region29
    $region28: #{tpu_custom_call.1} parent=1 // pred_region
      %107 = dma.done [#allocation4], 128
    $region29: #{tpu_custom_call.1} parent=1 // pred_fallthru
      _
    %108 = vsyncpa [#allocation3], 1
    %109 = vsyncpa [#allocation6], 1
    %110 = vsyncpa [#allocation4], 1

</llo_original>
